<compile_context>
chip_gen: v7x
topology: tpu7x:2x2x1
jax: 0.10.0
libtpu: 0.0.40
codegen_flags: <defaults>
</compile_context>

<pallas_src>
import jax
import jax.numpy as jnp
from jax.experimental import pallas as pl
from jax.experimental.pallas import tpu as pltpu

LANE = 128                       # pad feature dims to multiples of this
MAX_TILE_M = 256                 # max row tile for the aggregation matmul
FALLBACK_TILE_K = 1024           # K tile for the large-graph streaming path
VMEM_BUDGET = 24 * 1024 * 1024   # conservative fit check (safe on v7x 32 MiB scoped default)
VMEM_LIMIT = 32 * 1024 * 1024


def _round_up(x, m):
    return (x + m - 1) // m * m


# --------------------------------------------------------------------------
# Kernels
# --------------------------------------------------------------------------
def xw_kernel(x_ref, w_ref, o_ref):
    # (TILE_M, F) @ (F, H) on the MXU, bf16 inputs, f32 accumulation.
    o_ref[...] = jnp.dot(
        x_ref[...], w_ref[...], preferred_element_type=jnp.float32
    ).astype(o_ref.dtype)


def agg_fused_kernel(a_ref, xw_ref, b_ref, o_ref):
    # relu(A_row_slab @ XW + b) as one MXU dot over the full contraction dim:
    # no K grid axis, no scratch accumulator, lane-dense epilogue store.
    acc = jnp.dot(a_ref[...], xw_ref[...], preferred_element_type=jnp.float32)
    o_ref[...] = jnp.maximum(acc + b_ref[...], 0.0).astype(o_ref.dtype)


def agg_ktiled_kernel(a_ref, xw_ref, b_ref, o_ref, acc_ref):
    # Large-graph fallback: tiled A_norm @ XW with f32 accumulator; bias + ReLU
    # epilogue on the last K step.  grid = (row_tiles, k_tiles), K axis last.
    k = pl.program_id(1)

    @pl.when(k == 0)
    def _():
        acc_ref[...] = jnp.zeros_like(acc_ref)

    acc_ref[...] += jnp.dot(
        a_ref[...], xw_ref[...], preferred_element_type=jnp.float32
    )

    @pl.when(k == pl.num_programs(1) - 1)
    def _():
        o_ref[...] = jnp.maximum(acc_ref[...] + b_ref[...], 0.0).astype(o_ref.dtype)


# --------------------------------------------------------------------------
# One GCNConv (+ ReLU).  Operands already padded: N -> tile multiple, F/H -> 128.
# --------------------------------------------------------------------------
def gcn_layer(a_norm_bf16, x_bf16, w, b, out_dtype):
    n_pad, f_pad = x_bf16.shape
    h_pad = w.shape[1]
    tile_m = min(MAX_TILE_M, n_pad)
    row_tiles = n_pad // tile_m

    # Hoisted X @ W: computed once per layer, reused by every adjacency row slab.
    xw = pl.pallas_call(
        xw_kernel,
        out_shape=jax.ShapeDtypeStruct((n_pad, h_pad), jnp.bfloat16),
        grid=(row_tiles,),
        in_specs=[
            pl.BlockSpec((tile_m, f_pad), lambda i: (i, 0)),
            pl.BlockSpec((f_pad, h_pad), lambda i: (0, 0)),
        ],
        out_specs=pl.BlockSpec((tile_m, h_pad), lambda i: (i, 0)),
        compiler_params=pltpu.CompilerParams(
            dimension_semantics=("parallel",)),
    )(x_bf16, w.astype(jnp.bfloat16))

    bias = b.reshape(1, h_pad)
    out_itemsize = jnp.dtype(out_dtype).itemsize

    # VMEM estimate for the fused (no-K-axis) path: double-buffered A row slab,
    # resident XW (counted double-buffered to be safe), output tile, bias.
    fused_bytes = (
        2 * tile_m * n_pad * 2        # A row slab (bf16), double-buffered
        + 2 * n_pad * h_pad * 2       # resident XW (bf16)
        + 2 * tile_m * h_pad * out_itemsize
        + 2 * h_pad * 4
    )

    if fused_bytes <= VMEM_BUDGET:
        # Fused full-reduction path (moderate graphs).
        out = pl.pallas_call(
            agg_fused_kernel,
            out_shape=jax.ShapeDtypeStruct((n_pad, h_pad), out_dtype),
            grid=(row_tiles,),
            in_specs=[
                pl.BlockSpec((tile_m, n_pad), lambda i: (i, 0)),   # A row slab
                pl.BlockSpec((n_pad, h_pad), lambda i: (0, 0)),    # XW: DMA'd once, VMEM-resident
                pl.BlockSpec((1, h_pad), lambda i: (0, 0)),        # bias
            ],
            out_specs=pl.BlockSpec((tile_m, h_pad), lambda i: (i, 0)),
            compiler_params=pltpu.CompilerParams(
                dimension_semantics=("parallel",),
                vmem_limit_bytes=VMEM_LIMIT),
        )(a_norm_bf16, xw, bias)
    else:
        # Large-graph fallback: K-tiled reduction with large K tiles.
        # TODO(synk): resident XW + block-sparse adjacency for graphs past ~16k nodes.
        tile_k = FALLBACK_TILE_K
        while n_pad % tile_k != 0:
            tile_k //= 2
        k_tiles = n_pad // tile_k
        out = pl.pallas_call(
            agg_ktiled_kernel,
            out_shape=jax.ShapeDtypeStruct((n_pad, h_pad), out_dtype),
            grid=(row_tiles, k_tiles),
            in_specs=[
                pl.BlockSpec((tile_m, tile_k), lambda i, k: (i, k)),  # A tile
                pl.BlockSpec((tile_k, h_pad), lambda i, k: (k, 0)),   # XW K-slab
                pl.BlockSpec((1, h_pad), lambda i, k: (0, 0)),        # bias
            ],
            out_specs=pl.BlockSpec((tile_m, h_pad), lambda i, k: (i, 0)),
            scratch_shapes=[pltpu.VMEM((tile_m, h_pad), jnp.float32)],
            compiler_params=pltpu.CompilerParams(
                dimension_semantics=("parallel", "arbitrary"),
                vmem_limit_bytes=VMEM_LIMIT),
        )(a_norm_bf16, xw, bias)
    return out


# --------------------------------------------------------------------------
# Graph normalization glue (plain JAX) + forward
# --------------------------------------------------------------------------
def build_normalized_adjacency(edge_index, num_nodes):
    """Dense D^{-1/2}(A + I)D^{-1/2} from a (2, E) int edge_index (f32)."""
    src, dst = edge_index[0], edge_index[1]
    a = jnp.zeros((num_nodes, num_nodes), dtype=jnp.float32)
    a = a.at[dst, src].add(1.0)                    # message src -> dst
    eye = jnp.eye(num_nodes, dtype=jnp.float32)
    a = a * (1.0 - eye)                            # drop explicit self loops
    a_hat = a + eye                                # add weight-1 self loops
    deg = a_hat.sum(axis=1)
    deg_inv_sqrt = jnp.where(deg > 0, jax.lax.rsqrt(deg), 0.0)
    return deg_inv_sqrt[:, None] * a_hat * deg_inv_sqrt[None, :]


def gcn_forward(x, edge_index, params):
    n, f_in = x.shape
    hidden = params["w1"].shape[1]
    f_out = params["w2"].shape[1]

    tile_m = min(MAX_TILE_M, _round_up(n, 8))      # adaptive: tiny graphs stay tiny
    n_pad = _round_up(n, tile_m)
    f_pad = _round_up(f_in, LANE)
    h_pad = _round_up(hidden, LANE)
    o_pad = _round_up(f_out, LANE)

    a_norm = build_normalized_adjacency(edge_index, n)       # f32 normalization
    a_pad = jnp.zeros((n_pad, n_pad), jnp.bfloat16).at[:n, :n].set(
        a_norm.astype(jnp.bfloat16))

    x_pad = jnp.zeros((n_pad, f_pad), jnp.bfloat16).at[:n, :f_in].set(
        x.astype(jnp.bfloat16))
    w1 = jnp.zeros((f_pad, h_pad), jnp.float32).at[:f_in, :hidden].set(params["w1"])
    b1 = jnp.zeros((h_pad,), jnp.float32).at[:hidden].set(params["b1"])
    w2 = jnp.zeros((h_pad, o_pad), jnp.float32).at[:hidden, :f_out].set(params["w2"])
    b2 = jnp.zeros((o_pad,), jnp.float32).at[:f_out].set(params["b2"])

    # conv1 + ReLU; layer-1 output written in bf16 directly by the epilogue.
    h = gcn_layer(a_pad, x_pad, w1, b1, out_dtype=jnp.bfloat16)
    # dropout(p=0.5) -> identity in eval mode
    out = gcn_layer(a_pad, h, w2, b2, out_dtype=jnp.float32)   # conv2 + ReLU
    return out[:n, :f_out]


def gcn_reference(x, edge_index, params):
    """Pure-JAX f32 reference for correctness checking."""
    n = x.shape[0]
    a_norm = build_normalized_adjacency(edge_index, n)
    h = jnp.maximum(a_norm @ (x @ params["w1"]) + params["b1"], 0.0)
    return jnp.maximum(a_norm @ (h @ params["w2"]) + params["b2"], 0.0)


def init_params(key, num_features, hidden_channels):
    k1, k2 = jax.random.split(key)
    lim1 = (6.0 / (num_features + hidden_channels)) ** 0.5
    lim2 = (6.0 / (hidden_channels + num_features)) ** 0.5
    return {
        "w1": jax.random.uniform(k1, (num_features, hidden_channels),
                                 jnp.float32, -lim1, lim1),
        "b1": jnp.zeros((hidden_channels,), jnp.float32),
        "w2": jax.random.uniform(k2, (hidden_channels, num_features),
                                 jnp.float32, -lim2, lim2),
        "b2": jnp.zeros((num_features,), jnp.float32),
    }


if __name__ == "__main__":
    num_nodes = 16
    num_features = 8
    hidden_channels = 32
    num_edges = 40

    key = jax.random.PRNGKey(0)
    kx, ke, kp = jax.random.split(key, 3)

    x = jax.random.normal(kx, (num_nodes, num_features), jnp.float32)
    edge_index = jax.random.randint(ke, (2, num_edges), 0, num_nodes, jnp.int32)
    params = init_params(kp, num_features, hidden_channels)

    fwd = jax.jit(gcn_forward)
    out = jax.block_until_ready(fwd(x, edge_index, params))

    assert out.shape == (num_nodes, num_features)
    assert bool(jnp.all(out >= 0.0))                     # final ReLU (per module spec)
    ref = gcn_reference(x, edge_index, params)
    assert bool(jnp.allclose(out, ref, rtol=5e-2, atol=5e-2)), (
        "max abs err %f" % float(jnp.max(jnp.abs(out - ref))))
    print("KERNEL_OK")
</pallas_src>

<mosaic_0001>
module attributes {stable_mosaic.version = 11 : i64} {
  func.func @xw_kernel(%arg0: i32, %arg1: memref<16x128xbf16, #tpu.memory_space<vmem>>, %arg2: memref<128x128xbf16, #tpu.memory_space<vmem>>, %arg3: memref<16x128xbf16, #tpu.memory_space<vmem>>) attributes {dimension_semantics = [#tpu.dimension_semantics<parallel>], iteration_bounds = array<i64: 1>, scalar_prefetch = 0 : i64, scratch_operands = 0 : i64, tpu.core_type = #tpu.core_type<tc>, window_params = [{transform_indices = @transform_0, window_bounds = array<i64: 16, 128>}, {pipeline_mode = #tpu.pipeline_mode<synchronous>, transform_indices = @transform_1, window_bounds = array<i64: 128, 128>}, {transform_indices = @transform_2, window_bounds = array<i64: 16, 128>}]} {
    %c0 = arith.constant 0 : index
    %c0_0 = arith.constant 0 : index
    %0 = vector.load %arg1[%c0, %c0_0] : memref<16x128xbf16, #tpu.memory_space<vmem>>, vector<16x128xbf16>
    %c0_1 = arith.constant 0 : index
    %c0_2 = arith.constant 0 : index
    %1 = vector.load %arg2[%c0_1, %c0_2] : memref<128x128xbf16, #tpu.memory_space<vmem>>, vector<128x128xbf16>
    %cst = arith.constant dense<0.000000e+00> : vector<16x128xf32>
    %2 = tpu.matmul %0, %1, %cst {dimension_numbers = #tpu.dot_dimension_numbers<[1], [0], [0], [1], [0, 0, 1, 1], [], []>} : vector<16x128xbf16>, vector<128x128xbf16>, vector<16x128xf32> -> vector<16x128xf32>
    %3 = arith.truncf %2 : vector<16x128xf32> to vector<16x128xbf16>
    %c0_3 = arith.constant 0 : index
    %c0_4 = arith.constant 0 : index
    %4 = vector.load %arg3[%c0_3, %c0_4] : memref<16x128xbf16, #tpu.memory_space<vmem>>, vector<16x128xbf16>
    tpu.vector_store %arg3[%c0_3, %c0_4], %3 {strides = array<i32>} : memref<16x128xbf16, #tpu.memory_space<vmem>>, vector<16x128xbf16>,
    return
  }
  func.func @transform_0(%arg0: i32) -> (i32, i32) {
    %c0_i32 = arith.constant 0 : i32
    %c0_i32_0 = arith.constant 0 : i32
    return %arg0, %c0_i32 : i32, i32
  }
  func.func @transform_1(%arg0: i32) -> (i32, i32) {
    %c0_i32 = arith.constant 0 : i32
    %c0_i32_0 = arith.constant 0 : i32
    %c0_i32_1 = arith.constant 0 : i32
    return %c0_i32, %c0_i32_0 : i32, i32
  }
  func.func @transform_2(%arg0: i32) -> (i32, i32) {
    %c0_i32 = arith.constant 0 : i32
    %c0_i32_0 = arith.constant 0 : i32
    return %arg0, %c0_i32 : i32, i32
  }
}

module attributes {stable_mosaic.version = 11 : i64} {
  func.func @agg_fused_kernel(%arg0: i32, %arg1: memref<16x16xbf16, #tpu.memory_space<vmem>>, %arg2: memref<16x128xbf16, #tpu.memory_space<vmem>>, %arg3: memref<1x128xf32, #tpu.memory_space<vmem>>, %arg4: memref<16x128xbf16, #tpu.memory_space<vmem>>) attributes {dimension_semantics = [#tpu.dimension_semantics<parallel>], iteration_bounds = array<i64: 1>, scalar_prefetch = 0 : i64, scratch_operands = 0 : i64, tpu.core_type = #tpu.core_type<tc>, window_params = [{transform_indices = @transform_0, window_bounds = array<i64: 16, 16>}, {pipeline_mode = #tpu.pipeline_mode<synchronous>, transform_indices = @transform_1, window_bounds = array<i64: 16, 128>}, {pipeline_mode = #tpu.pipeline_mode<synchronous>, transform_indices = @transform_2, window_bounds = array<i64: 1, 128>}, {transform_indices = @transform_3, window_bounds = array<i64: 16, 128>}]} {
    %c0 = arith.constant 0 : index
    %c0_0 = arith.constant 0 : index
    %0 = vector.load %arg1[%c0, %c0_0] : memref<16x16xbf16, #tpu.memory_space<vmem>>, vector<16x16xbf16>
    %c0_1 = arith.constant 0 : index
    %c0_2 = arith.constant 0 : index
    %1 = vector.load %arg2[%c0_1, %c0_2] : memref<16x128xbf16, #tpu.memory_space<vmem>>, vector<16x128xbf16>
    %cst = arith.constant dense<0.000000e+00> : vector<16x128xf32>
    %2 = tpu.matmul %0, %1, %cst {dimension_numbers = #tpu.dot_dimension_numbers<[1], [0], [0], [1], [0, 0, 1, 1], [], []>} : vector<16x16xbf16>, vector<16x128xbf16>, vector<16x128xf32> -> vector<16x128xf32>
    %c0_3 = arith.constant 0 : index
    %c0_4 = arith.constant 0 : index
    %3 = vector.load %arg3[%c0_3, %c0_4] : memref<1x128xf32, #tpu.memory_space<vmem>>, vector<1x128xf32>
    %4 = vector.broadcast %3 : vector<1x128xf32> to vector<16x128xf32>
    %5 = arith.addf %2, %4 : vector<16x128xf32>
    %cst_5 = arith.constant 0.000000e+00 : f32
    %6 = vector.broadcast %cst_5 : f32 to vector<16x128xf32>
    %7 = arith.maximumf %5, %6 : vector<16x128xf32>
    %8 = arith.truncf %7 : vector<16x128xf32> to vector<16x128xbf16>
    %c0_6 = arith.constant 0 : index
    %c0_7 = arith.constant 0 : index
    %9 = vector.load %arg4[%c0_6, %c0_7] : memref<16x128xbf16, #tpu.memory_space<vmem>>, vector<16x128xbf16>
    tpu.vector_store %arg4[%c0_6, %c0_7], %8 {strides = array<i32>} : memref<16x128xbf16, #tpu.memory_space<vmem>>, vector<16x128xbf16>,
    return
  }
  func.func @transform_0(%arg0: i32) -> (i32, i32) {
    %c0_i32 = arith.constant 0 : i32
    %c0_i32_0 = arith.constant 0 : i32
    return %arg0, %c0_i32 : i32, i32
  }
  func.func @transform_1(%arg0: i32) -> (i32, i32) {
    %c0_i32 = arith.constant 0 : i32
    %c0_i32_0 = arith.constant 0 : i32
    %c0_i32_1 = arith.constant 0 : i32
    return %c0_i32, %c0_i32_0 : i32, i32
  }
  func.func @transform_2(%arg0: i32) -> (i32, i32) {
    %c0_i32 = arith.constant 0 : i32
    %c0_i32_0 = arith.constant 0 : i32
    %c0_i32_1 = arith.constant 0 : i32
    return %c0_i32, %c0_i32_0 : i32, i32
  }
  func.func @transform_3(%arg0: i32) -> (i32, i32) {
    %c0_i32 = arith.constant 0 : i32
    %c0_i32_0 = arith.constant 0 : i32
    return %arg0, %c0_i32 : i32, i32
  }
}

module attributes {stable_mosaic.version = 11 : i64} {
  func.func @agg_fused_kernel(%arg0: i32, %arg1: memref<16x16xbf16, #tpu.memory_space<vmem>>, %arg2: memref<16x128xbf16, #tpu.memory_space<vmem>>, %arg3: memref<1x128xf32, #tpu.memory_space<vmem>>, %arg4: memref<16x128xf32, #tpu.memory_space<vmem>>) attributes {dimension_semantics = [#tpu.dimension_semantics<parallel>], iteration_bounds = array<i64: 1>, scalar_prefetch = 0 : i64, scratch_operands = 0 : i64, tpu.core_type = #tpu.core_type<tc>, window_params = [{transform_indices = @transform_0, window_bounds = array<i64: 16, 16>}, {pipeline_mode = #tpu.pipeline_mode<synchronous>, transform_indices = @transform_1, window_bounds = array<i64: 16, 128>}, {pipeline_mode = #tpu.pipeline_mode<synchronous>, transform_indices = @transform_2, window_bounds = array<i64: 1, 128>}, {transform_indices = @transform_3, window_bounds = array<i64: 16, 128>}]} {
    %c0 = arith.constant 0 : index
    %c0_0 = arith.constant 0 : index
    %0 = vector.load %arg1[%c0, %c0_0] : memref<16x16xbf16, #tpu.memory_space<vmem>>, vector<16x16xbf16>
    %c0_1 = arith.constant 0 : index
    %c0_2 = arith.constant 0 : index
    %1 = vector.load %arg2[%c0_1, %c0_2] : memref<16x128xbf16, #tpu.memory_space<vmem>>, vector<16x128xbf16>
    %cst = arith.constant dense<0.000000e+00> : vector<16x128xf32>
    %2 = tpu.matmul %0, %1, %cst {dimension_numbers = #tpu.dot_dimension_numbers<[1], [0], [0], [1], [0, 0, 1, 1], [], []>} : vector<16x16xbf16>, vector<16x128xbf16>, vector<16x128xf32> -> vector<16x128xf32>
    %c0_3 = arith.constant 0 : index
    %c0_4 = arith.constant 0 : index
    %3 = vector.load %arg3[%c0_3, %c0_4] : memref<1x128xf32, #tpu.memory_space<vmem>>, vector<1x128xf32>
    %4 = vector.broadcast %3 : vector<1x128xf32> to vector<16x128xf32>
    %5 = arith.addf %2, %4 : vector<16x128xf32>
    %cst_5 = arith.constant 0.000000e+00 : f32
    %6 = vector.broadcast %cst_5 : f32 to vector<16x128xf32>
    %7 = arith.maximumf %5, %6 : vector<16x128xf32>
    %c0_6 = arith.constant 0 : index
    %c0_7 = arith.constant 0 : index
    %8 = vector.load %arg4[%c0_6, %c0_7] : memref<16x128xf32, #tpu.memory_space<vmem>>, vector<16x128xf32>
    tpu.vector_store %arg4[%c0_6, %c0_7], %7 {strides = array<i32>} : memref<16x128xf32, #tpu.memory_space<vmem>>, vector<16x128xf32>,
    return
  }
  func.func @transform_0(%arg0: i32) -> (i32, i32) {
    %c0_i32 = arith.constant 0 : i32
    %c0_i32_0 = arith.constant 0 : i32
    return %arg0, %c0_i32 : i32, i32
  }
  func.func @transform_1(%arg0: i32) -> (i32, i32) {
    %c0_i32 = arith.constant 0 : i32
    %c0_i32_0 = arith.constant 0 : i32
    %c0_i32_1 = arith.constant 0 : i32
    return %c0_i32, %c0_i32_0 : i32, i32
  }
  func.func @transform_2(%arg0: i32) -> (i32, i32) {
    %c0_i32 = arith.constant 0 : i32
    %c0_i32_0 = arith.constant 0 : i32
    %c0_i32_1 = arith.constant 0 : i32
    return %c0_i32, %c0_i32_0 : i32, i32
  }
  func.func @transform_3(%arg0: i32) -> (i32, i32) {
    %c0_i32 = arith.constant 0 : i32
    %c0_i32_0 = arith.constant 0 : i32
    return %arg0, %c0_i32 : i32, i32
  }
}

</mosaic_0001>

<llo_original>
// kernel: gcn_forward.5
$region0: #{gcn_forward.5}
  #allocation0 [shape = 'u32[]', space=smem, size = 0x4, offset = 0x4, fixed_abs, tag = 'smem constant byte address 0x4 - core index']
  #allocation1 [shape = 'u32[144,128]{1,0:T(1,128)}', space=vmem, size = 0x12000, scoped, tag = 'internal scratch']
  %s0 = inlined_call_operand.vmem [shape: bf16[16,16], index: 0, kind: input, shape index: {}]
  %s1 = inlined_call_operand.vmem [shape: bf16[16,128], index: 1, kind: input, shape index: {}]
  %s2 = inlined_call_operand.vmem [shape: f32[1,128], index: 2, kind: input, shape index: {}]
  %s3 = inlined_call_operand.vmem [shape: bf16[16,128], index: 3, kind: output, shape index: {}]
  %s4 = sld [smem:[#allocation0]]
  $region22: #{gcn_forward.5} parent=0
    _
  %s6 = ssub.s32 1, %s4
  %s7 = scalar_select 0, %s6, %s4
  // Predicated region
  $region2: #{gcn_forward.5} parent=0 // pred_check
    _
  $region3: #{gcn_forward.5} parent=0 // pred_check_branch
    %9 = sbr.rel (0) target = $region5
  $region4: #{gcn_forward.5} parent=0 // pred_region
    _
  $region5: #{gcn_forward.5} parent=0 // pred_fallthru
    _
  // Predicated region
  $region6: #{gcn_forward.5} parent=0 // pred_check
    _
  $region7: #{gcn_forward.5} parent=0 // pred_check_branch
    %11 = sbr.rel (0) target = $region9
  $region8: #{gcn_forward.5} parent=0 // pred_region
    _
  $region9: #{gcn_forward.5} parent=0 // pred_fallthru
    _
  // Predicated region
  $region10: #{gcn_forward.5} parent=0 // pred_check
    _
  $region11: #{gcn_forward.5} parent=0 // pred_check_branch
    %13 = sbr.rel (0) target = $region13
  $region12: #{gcn_forward.5} parent=0 // pred_region
    _
  $region13: #{gcn_forward.5} parent=0 // pred_fallthru
    _
  %v15 = vld [vmem:[%s0] sm:$0xf]
  %v16 = vld [vmem:[%s0 + $0x4] sm:$0xf]
  %v17 = vld [vmem:[%s1] sm:$0xf]
  %v18 = vld [vmem:[%s1 + $0x4] sm:$0xf]
  %v19 = vld [vmem:[%s2] sm:$0x1]
  %v21 = vlaneseq
  %v22 = vshrl.u32 %v21, 7
  %v23 = vsub.s32 0, %v22
  %v24 = vrot.slane %v19, %v23
  %v28 = vunpack.c.l.b16 %v15
  %v29 = vunpack.c.l.b16 %v16
  %v30 = vpack.c.b16 %v29, %v28
  %v33 = vunpack.c.l.b16 %v17
  %v34 = vunpack.c.l.b16 %v18
  %v35 = vpack.c.b16 %v34, %v33
  %vm37 = vcmask 130048
  %v39 = vsel %vm37, %v30, 0
  %41 = vmatprep.subr.bf16.mxu0 0
  %42 = vmatpush1.bf16.msra.mxu0 %v35
  %43 = vmatprep.subr.bf16.mxu0 0
  %44 = vmatpush1.bf16.msra.mxu0 0
  %45 = vmatprep.subr.bf16.mxu0 0
  %46 = vmatpush1.bf16.msra.mxu0 0
  %47 = vmatprep.subr.bf16.mxu0 0
  %48 = vmatpush1.bf16.msra.mxu0 0
  %49 = vmatprep.subr.bf16.mxu0 0
  %50 = vmatpush1.bf16.msra.mxu0 0
  %51 = vmatprep.subr.bf16.mxu0 0
  %52 = vmatpush1.bf16.msra.mxu0 0
  %53 = vmatprep.subr.bf16.mxu0 0
  %54 = vmatpush1.bf16.msra.mxu0 0
  %55 = vmatprep.subr.bf16.mxu0 0
  %56 = vmatpush1.bf16.msra.mxu0 0
  %57 = vmatprep.subr.bf16.mxu0 0
  %58 = vmatpush1.bf16.msra.mxu0 0
  %59 = vmatprep.subr.bf16.mxu0 0
  %60 = vmatpush1.bf16.msra.mxu0 0
  %61 = vmatprep.subr.bf16.mxu0 0
  %62 = vmatpush1.bf16.msra.mxu0 0
  %63 = vmatprep.subr.bf16.mxu0 0
  %64 = vmatpush1.bf16.msra.mxu0 0
  %65 = vmatprep.subr.bf16.mxu0 0
  %66 = vmatpush1.bf16.msra.mxu0 0
  %67 = vmatprep.subr.bf16.mxu0 0
  %68 = vmatpush1.bf16.msra.mxu0 0
  %69 = vmatprep.subr.bf16.mxu0 0
  %70 = vmatpush1.bf16.msra.mxu0 0
  %71 = vmatprep.subr.bf16.mxu0 0
  %72 = vmatpush1.bf16.msra.mxu0 0
  %73 = vmatprep.mubr.bf16.mxu0 0
  %74 = vmatmul.mubr.bf16.gmra.mrb[0].mxu0 %v39
  %v75 = vpop.f32.mrb[0].mxu0
  %v76 = vadd.f32 %v24, %v75
  %v77 = vpop.f32.mrb[0].mxu0
  %v78 = vpop.f32.mrb[0].mxu0
  %v79 = vadd.f32 %v24, %v78
  %v80 = vpop.f32.mrb[0].mxu0
  %81 = vdwg.mxu0
  %v82 = vmax.f32 %v76, 0.0
  %v83 = vmax.f32 %v79, 0.0
  %v84 = vpack.c.bf16 %v83, %v82
  %v86 = vunpack.c.l.b16 %v84
  %v87 = vunpack.c.h.b16 %v84
  %v88 = vpack.c.b16 %v86, %v86
  %v89 = vpack.c.b16 %v87, %v87
  %92 = vst [vmem:[%s3] sm:$0xf] %v88
  %93 = vst [vmem:[%s3 + $0x4] sm:$0xf] %v89
  // Predicated region
  $region14: #{gcn_forward.5} parent=0 // pred_check
    _
  $region15: #{gcn_forward.5} parent=0 // pred_check_branch
    %95 = sbr.rel (0) target = $region17
  $region16: #{gcn_forward.5} parent=0 // pred_region
    _
  $region17: #{gcn_forward.5} parent=0 // pred_fallthru
    _
  // Predicated region
  $region18: #{gcn_forward.5} parent=0 // pred_check
    _
  $region19: #{gcn_forward.5} parent=0 // pred_check_branch
    %97 = sbr.rel (0) target = $region21
  $region20: #{gcn_forward.5} parent=0 // pred_region
    _
  $region21: #{gcn_forward.5} parent=0 // pred_fallthru
    _

// kernel: gcn_forward.4
$region0: #{gcn_forward.4}
  #allocation0 [shape = 'u32[]', space=smem, size = 0x4, offset = 0x4, fixed_abs, tag = 'smem constant byte address 0x4 - core index']
  #allocation1 [shape = 'u32[144,128]{1,0:T(1,128)}', space=vmem, size = 0x12000, scoped, tag = 'internal scratch']
  %s0 = inlined_call_operand.vmem [shape: bf16[16,128], index: 0, kind: input, shape index: {}]
  %s1 = inlined_call_operand.vmem [shape: bf16[128,128], index: 1, kind: input, shape index: {}]
  %s2 = inlined_call_operand.vmem [shape: bf16[16,128], index: 2, kind: output, shape index: {}]
  %s3 = sld [smem:[#allocation0]]
  $region18: #{gcn_forward.4} parent=0
    _
  %s5 = ssub.s32 1, %s3
  %s6 = scalar_select 0, %s5, %s3
  // Predicated region
  $region2: #{gcn_forward.4} parent=0 // pred_check
    _
  $region3: #{gcn_forward.4} parent=0 // pred_check_branch
    %8 = sbr.rel (0) target = $region5
  $region4: #{gcn_forward.4} parent=0 // pred_region
    _
  $region5: #{gcn_forward.4} parent=0 // pred_fallthru
    _
  // Predicated region
  $region6: #{gcn_forward.4} parent=0 // pred_check
    _
  $region7: #{gcn_forward.4} parent=0 // pred_check_branch
    %10 = sbr.rel (0) target = $region9
  $region8: #{gcn_forward.4} parent=0 // pred_region
    _
  $region9: #{gcn_forward.4} parent=0 // pred_fallthru
    _
  %v12 = vld [vmem:[%s0] sm:$0xf]
  %v13 = vld [vmem:[%s0 + $0x4] sm:$0xf]
  %v14 = vld [vmem:[%s1] sm:$0xf]
  %v15 = vld [vmem:[%s1 + $0x4] sm:$0xf]
  %v16 = vld [vmem:[%s1 + $0x8] sm:$0xf]
  %v17 = vld [vmem:[%s1 + $0xc] sm:$0xf]
  %v18 = vld [vmem:[%s1 + $0x10] sm:$0xf]
  %v19 = vld [vmem:[%s1 + $0x14] sm:$0xf]
  %v20 = vld [vmem:[%s1 + $0x18] sm:$0xf]
  %v21 = vld [vmem:[%s1 + $0x1c] sm:$0xf]
  %v22 = vld [vmem:[%s1 + $0x20] sm:$0xf]
  %v23 = vld [vmem:[%s1 + $0x24] sm:$0xf]
  %v24 = vld [vmem:[%s1 + $0x28] sm:$0xf]
  %v25 = vld [vmem:[%s1 + $0x2c] sm:$0xf]
  %v26 = vld [vmem:[%s1 + $0x30] sm:$0xf]
  %v27 = vld [vmem:[%s1 + $0x34] sm:$0xf]
  %v28 = vld [vmem:[%s1 + $0x38] sm:$0xf]
  %v29 = vld [vmem:[%s1 + $0x3c] sm:$0xf]
  %v32 = vunpack.c.l.b16 %v12
  %v33 = vunpack.c.l.b16 %v13
  %v34 = vpack.c.b16 %v33, %v32
  %v52 = vunpack.c.l.b16 %v14
  %v53 = vunpack.c.l.b16 %v15
  %v54 = vunpack.c.l.b16 %v16
  %v55 = vunpack.c.l.b16 %v17
  %v56 = vunpack.c.l.b16 %v18
  %v57 = vunpack.c.l.b16 %v19
  %v58 = vunpack.c.l.b16 %v20
  %v59 = vunpack.c.l.b16 %v21
  %v60 = vunpack.c.l.b16 %v22
  %v61 = vunpack.c.l.b16 %v23
  %v62 = vunpack.c.l.b16 %v24
  %v63 = vunpack.c.l.b16 %v25
  %v64 = vunpack.c.l.b16 %v26
  %v65 = vunpack.c.l.b16 %v27
  %v66 = vunpack.c.l.b16 %v28
  %v67 = vunpack.c.l.b16 %v29
  %v68 = vpack.c.b16 %v53, %v52
  %v69 = vpack.c.b16 %v55, %v54
  %v70 = vpack.c.b16 %v57, %v56
  %v71 = vpack.c.b16 %v59, %v58
  %v72 = vpack.c.b16 %v61, %v60
  %v73 = vpack.c.b16 %v63, %v62
  %v74 = vpack.c.b16 %v65, %v64
  %v75 = vpack.c.b16 %v67, %v66
  %84 = vmatprep.subr.bf16.mxu0 0
  %85 = vmatpush1.bf16.msra.mxu0 %v68
  %86 = vmatprep.subr.bf16.mxu0 0
  %87 = vmatpush1.bf16.msra.mxu0 %v69
  %88 = vmatprep.subr.bf16.mxu0 0
  %89 = vmatpush1.bf16.msra.mxu0 %v70
  %90 = vmatprep.subr.bf16.mxu0 0
  %91 = vmatpush1.bf16.msra.mxu0 %v71
  %92 = vmatprep.subr.bf16.mxu0 0
  %93 = vmatpush1.bf16.msra.mxu0 %v72
  %94 = vmatprep.subr.bf16.mxu0 0
  %95 = vmatpush1.bf16.msra.mxu0 %v73
  %96 = vmatprep.subr.bf16.mxu0 0
  %97 = vmatpush1.bf16.msra.mxu0 %v74
  %98 = vmatprep.subr.bf16.mxu0 0
  %99 = vmatpush1.bf16.msra.mxu0 %v75
  %100 = vmatprep.subr.bf16.mxu0 0
  %101 = vmatpush1.bf16.msra.mxu0 0
  %102 = vmatprep.subr.bf16.mxu0 0
  %103 = vmatpush1.bf16.msra.mxu0 0
  %104 = vmatprep.subr.bf16.mxu0 0
  %105 = vmatpush1.bf16.msra.mxu0 0
  %106 = vmatprep.subr.bf16.mxu0 0
  %107 = vmatpush1.bf16.msra.mxu0 0
  %108 = vmatprep.subr.bf16.mxu0 0
  %109 = vmatpush1.bf16.msra.mxu0 0
  %110 = vmatprep.subr.bf16.mxu0 0
  %111 = vmatpush1.bf16.msra.mxu0 0
  %112 = vmatprep.subr.bf16.mxu0 0
  %113 = vmatpush1.bf16.msra.mxu0 0
  %114 = vmatprep.subr.bf16.mxu0 0
  %115 = vmatpush1.bf16.msra.mxu0 0
  %116 = vmatprep.mubr.bf16.mxu0 0
  %117 = vmatmul.mubr.bf16.gmra.mrb[0].mxu0 %v34
  %v118 = vpop.f32.mrb[0].mxu0
  %v119 = vadd.f32 0.0, %v118
  %v120 = vpop.f32.mrb[0].mxu0
  %v121 = vpop.f32.mrb[0].mxu0
  %v122 = vadd.f32 0.0, %v121
  %v123 = vpop.f32.mrb[0].mxu0
  %124 = vdwg.mxu0
  %v125 = vpack.c.bf16 %v122, %v119
  %v127 = vunpack.c.l.b16 %v125
  %v128 = vunpack.c.h.b16 %v125
  %v129 = vpack.c.b16 %v127, %v127
  %v130 = vpack.c.b16 %v128, %v128
  %133 = vst [vmem:[%s2] sm:$0xf] %v129
  %134 = vst [vmem:[%s2 + $0x4] sm:$0xf] %v130
  // Predicated region
  $region10: #{gcn_forward.4} parent=0 // pred_check
    _
  $region11: #{gcn_forward.4} parent=0 // pred_check_branch
    %136 = sbr.rel (0) target = $region13
  $region12: #{gcn_forward.4} parent=0 // pred_region
    _
  $region13: #{gcn_forward.4} parent=0 // pred_fallthru
    _
  // Predicated region
  $region14: #{gcn_forward.4} parent=0 // pred_check
    _
  $region15: #{gcn_forward.4} parent=0 // pred_check_branch
    %138 = sbr.rel (0) target = $region17
  $region16: #{gcn_forward.4} parent=0 // pred_region
    _
  $region17: #{gcn_forward.4} parent=0 // pred_fallthru
    _

// kernel: gcn_forward.7
$region0: #{gcn_forward.7}
  #allocation0 [shape = 'u32[]', space=smem, size = 0x4, offset = 0x4, fixed_abs, tag = 'smem constant byte address 0x4 - core index']
  #allocation1 [shape = 'u32[144,128]{1,0:T(1,128)}', space=vmem, size = 0x12000, scoped, tag = 'internal scratch']
  %s0 = inlined_call_operand.vmem [shape: bf16[16,16], index: 0, kind: input, shape index: {}]
  %s1 = inlined_call_operand.vmem [shape: bf16[16,128], index: 1, kind: input, shape index: {}]
  %s2 = inlined_call_operand.vmem [shape: f32[1,128], index: 2, kind: input, shape index: {}]
  %s3 = inlined_call_operand.vmem [shape: f32[16,128], index: 3, kind: output, shape index: {}]
  %s4 = sld [smem:[#allocation0]]
  $region22: #{gcn_forward.7} parent=0
    _
  %s6 = ssub.s32 1, %s4
  %s7 = scalar_select 0, %s6, %s4
  // Predicated region
  $region2: #{gcn_forward.7} parent=0 // pred_check
    _
  $region3: #{gcn_forward.7} parent=0 // pred_check_branch
    %9 = sbr.rel (0) target = $region5
  $region4: #{gcn_forward.7} parent=0 // pred_region
    _
  $region5: #{gcn_forward.7} parent=0 // pred_fallthru
    _
  // Predicated region
  $region6: #{gcn_forward.7} parent=0 // pred_check
    _
  $region7: #{gcn_forward.7} parent=0 // pred_check_branch
    %11 = sbr.rel (0) target = $region9
  $region8: #{gcn_forward.7} parent=0 // pred_region
    _
  $region9: #{gcn_forward.7} parent=0 // pred_fallthru
    _
  // Predicated region
  $region10: #{gcn_forward.7} parent=0 // pred_check
    _
  $region11: #{gcn_forward.7} parent=0 // pred_check_branch
    %13 = sbr.rel (0) target = $region13
  $region12: #{gcn_forward.7} parent=0 // pred_region
    _
  $region13: #{gcn_forward.7} parent=0 // pred_fallthru
    _
  %v15 = vld [vmem:[%s0] sm:$0xf]
  %v16 = vld [vmem:[%s0 + $0x4] sm:$0xf]
  %v17 = vld [vmem:[%s1] sm:$0xf]
  %v18 = vld [vmem:[%s1 + $0x4] sm:$0xf]
  %v19 = vld [vmem:[%s2] sm:$0x1]
  %v21 = vlaneseq
  %v22 = vshrl.u32 %v21, 7
  %v23 = vsub.s32 0, %v22
  %v24 = vrot.slane %v19, %v23
  %v28 = vunpack.c.l.b16 %v15
  %v29 = vunpack.c.l.b16 %v16
  %v30 = vpack.c.b16 %v29, %v28
  %v33 = vunpack.c.l.b16 %v17
  %v34 = vunpack.c.l.b16 %v18
  %v35 = vpack.c.b16 %v34, %v33
  %vm37 = vcmask 130048
  %v39 = vsel %vm37, %v30, 0
  %41 = vmatprep.subr.bf16.mxu0 0
  %42 = vmatpush1.bf16.msra.mxu0 %v35
  %43 = vmatprep.subr.bf16.mxu0 0
  %44 = vmatpush1.bf16.msra.mxu0 0
  %45 = vmatprep.subr.bf16.mxu0 0
  %46 = vmatpush1.bf16.msra.mxu0 0
  %47 = vmatprep.subr.bf16.mxu0 0
  %48 = vmatpush1.bf16.msra.mxu0 0
  %49 = vmatprep.subr.bf16.mxu0 0
  %50 = vmatpush1.bf16.msra.mxu0 0
  %51 = vmatprep.subr.bf16.mxu0 0
  %52 = vmatpush1.bf16.msra.mxu0 0
  %53 = vmatprep.subr.bf16.mxu0 0
  %54 = vmatpush1.bf16.msra.mxu0 0
  %55 = vmatprep.subr.bf16.mxu0 0
  %56 = vmatpush1.bf16.msra.mxu0 0
  %57 = vmatprep.subr.bf16.mxu0 0
  %58 = vmatpush1.bf16.msra.mxu0 0
  %59 = vmatprep.subr.bf16.mxu0 0
  %60 = vmatpush1.bf16.msra.mxu0 0
  %61 = vmatprep.subr.bf16.mxu0 0
  %62 = vmatpush1.bf16.msra.mxu0 0
  %63 = vmatprep.subr.bf16.mxu0 0
  %64 = vmatpush1.bf16.msra.mxu0 0
  %65 = vmatprep.subr.bf16.mxu0 0
  %66 = vmatpush1.bf16.msra.mxu0 0
  %67 = vmatprep.subr.bf16.mxu0 0
  %68 = vmatpush1.bf16.msra.mxu0 0
  %69 = vmatprep.subr.bf16.mxu0 0
  %70 = vmatpush1.bf16.msra.mxu0 0
  %71 = vmatprep.subr.bf16.mxu0 0
  %72 = vmatpush1.bf16.msra.mxu0 0
  %73 = vmatprep.mubr.bf16.mxu0 0
  %74 = vmatmul.mubr.bf16.gmra.mrb[0].mxu0 %v39
  %v75 = vpop.f32.mrb[0].mxu0
  %v76 = vadd.f32 %v24, %v75
  %v77 = vpop.f32.mrb[0].mxu0
  %v78 = vpop.f32.mrb[0].mxu0
  %v79 = vadd.f32 %v24, %v78
  %v80 = vpop.f32.mrb[0].mxu0
  %81 = vdwg.mxu0
  %v82 = vmax.f32 %v76, 0.0
  %v83 = vmax.f32 %v79, 0.0
  %84 = vst [vmem:[%s3] sm:$0xff] %v82
  %85 = vst [vmem:[%s3 + $0x8] sm:$0xff] %v83
  // Predicated region
  $region14: #{gcn_forward.7} parent=0 // pred_check
    _
  $region15: #{gcn_forward.7} parent=0 // pred_check_branch
    %87 = sbr.rel (0) target = $region17
  $region16: #{gcn_forward.7} parent=0 // pred_region
    _
  $region17: #{gcn_forward.7} parent=0 // pred_fallthru
    _
  // Predicated region
  $region18: #{gcn_forward.7} parent=0 // pred_check
    _
  $region19: #{gcn_forward.7} parent=0 // pred_check_branch
    %89 = sbr.rel (0) target = $region21
  $region20: #{gcn_forward.7} parent=0 // pred_region
    _
  $region21: #{gcn_forward.7} parent=0 // pred_fallthru
    _

</llo_original>
